<compile_context>
chip_gen: v7x
topology: tpu7x:2x2x1
jax: 0.10.0
libtpu: 0.0.40
codegen_flags: <defaults>
</compile_context>

<pallas_src>
import functools
import math

import jax
import jax.numpy as jnp
from jax import lax
from jax.experimental import pallas as pl
from jax.experimental.pallas import tpu as pltpu

_INV_SQRT2 = 0.7071067811865476
_VMEM_BUDGET = 44 * 1024 * 1024   # keep resident bytes safe for v7x's 64 MiB VMEM/TC
_TK_MAX = 2048                    # contraction tile cap (decouples VMEM from dim_in)


def _geglu_kernel(x_ref, w_ref, b_ref, o_ref, *acc_refs, num_k):
    # x_ref: (tm, tk)      activations, native dtype (bf16/f32)
    # w_ref: (2, tn, tk)   PyTorch Linear rows: [0]=value half, [1]=gate half
    # b_ref: (2, tn)       bias:                 [0]=value half, [1]=gate half
    # o_ref: (tm, tn)
    # acc_refs: () when num_k == 1, else (acc_h, acc_g) f32 scratch accumulators
    dn = (((1,), (1,)), ((), ()))          # contract x[-1] with w[-1] (no weight transpose)
    x = x_ref[...]                         # native dtype straight into the MXU
    h = lax.dot_general(x, w_ref[0], dn, preferred_element_type=jnp.float32)
    g = lax.dot_general(x, w_ref[1], dn, preferred_element_type=jnp.float32)

    def epilogue(h_acc, g_acc):
        b = b_ref[...].astype(jnp.float32)
        hv = h_acc + b[0:1, :]
        gv = g_acc + b[1:2, :]
        # Exact GELU (matches torch.nn.functional.gelu, approximate='none').
        gelu_g = 0.5 * gv * (1.0 + lax.erf(gv * jnp.float32(_INV_SQRT2)))
        o_ref[...] = (hv * gelu_g).astype(o_ref.dtype)

    if num_k == 1:
        # Whole contraction in one step: no scratch, write output directly.
        epilogue(h, g)
    else:
        acc_h, acc_g = acc_refs
        k = pl.program_id(2)

        @pl.when(k == 0)
        def _():
            acc_h[...] = h
            acc_g[...] = g

        @pl.when(k > 0)
        def _():
            acc_h[...] = acc_h[...] + h
            acc_g[...] = acc_g[...] + g

        @pl.when(k == num_k - 1)
        def _():
            epilogue(acc_h[...], acc_g[...])


def _pick_tk(dim_in):
    """Largest lane-aligned contraction tile (<= _TK_MAX) that divides dim_in."""
    if dim_in <= _TK_MAX:
        return dim_in
    cand = (_TK_MAX // 128) * 128
    while cand >= 128:
        if dim_in % cand == 0:
            return cand
        cand -= 128
    return dim_in  # no lane-aligned divisor; fall back to the full contraction


def _vmem_bytes(tm, tn, tk, num_k, x_bytes, w_bytes, o_bytes):
    est = (2 * tm * tk * x_bytes            # x tile, double-buffered
           + 2 * 2 * tn * tk * w_bytes      # weight tile (both halves), double-buffered
           + 2 * tm * tn * o_bytes          # output tile, double-buffered
           + 2 * 2 * tn * 4                 # bias
           + 6 * tm * tn * 4)               # f32 h/g/gelu temporaries headroom
    if num_k > 1:
        est += 2 * tm * tn * 4              # f32 accumulators
    return est


@jax.jit
def geglu(x, w_proj, b_proj):
    """GEGLU forward.

    x:      (..., dim_in)
    w_proj: (2*dim_out, dim_in)   -- PyTorch nn.Linear weight layout (never transposed)
    b_proj: (2*dim_out,)
    returns (..., dim_out)
    """
    dim_in = x.shape[-1]
    dim_out = w_proj.shape[0] // 2

    lead_shape = x.shape[:-1]
    M = math.prod(lead_shape) if lead_shape else 1
    x2d = x.reshape(M, dim_in)

    # Free reshapes: value half = [0], gate half = [1]; PyTorch row layout preserved.
    w3 = w_proj.reshape(2, dim_out, dim_in)
    b2 = b_proj.reshape(2, dim_out)

    # Pad dim_out to a multiple of 128 (weights/bias only) so output stores are
    # always lane-dense unmasked vst; padded columns are sliced off at the end.
    dim_out_p = ((dim_out + 127) // 128) * 128
    if dim_out_p != dim_out:
        w3 = jnp.pad(w3, ((0, 0), (0, dim_out_p - dim_out), (0, 0)))
        b2 = jnp.pad(b2, ((0, 0), (0, dim_out_p - dim_out)))

    x_bytes = jnp.dtype(x.dtype).itemsize
    w_bytes = jnp.dtype(w_proj.dtype).itemsize

    # ---- tile selection (static, from shapes) -------------------------------
    tk = _pick_tk(dim_in)
    num_k = dim_in // tk

    # Row tile: 512 for large M (weight-stream arithmetic intensity ~ tm flops/byte);
    # small M collapses to one sublane-aligned tile (16 for bf16, 8 for f32).
    sub = 16 if x_bytes <= 2 else 8
    tm = 512 if M >= 512 else ((M + sub - 1) // sub) * sub

    # Output-column tile: largest multiple of 128 (<=512) dividing padded dim_out.
    tn = min(512, dim_out_p)
    while dim_out_p % tn != 0:
        tn -= 128

    # Shrink tiles if the double-buffered footprint would not fit v7x's 64 MiB VMEM.
    if _vmem_bytes(tm, tn, tk, num_k, x_bytes, w_bytes, x_bytes) > _VMEM_BUDGET and tm > 256:
        tm = 256
    while _vmem_bytes(tm, tn, tk, num_k, x_bytes, w_bytes, x_bytes) > _VMEM_BUDGET and tn > 128:
        tn -= 128
        while dim_out_p % tn != 0:
            tn -= 128

    n_tiles = dim_out_p // tn
    m_tiles = pl.cdiv(M, tm)          # no wrapper pad: last partial row block is masked
    grid = (n_tiles, m_tiles, num_k)  # col-tile OUTER, row-tile inner, contraction last

    scratch_shapes = ([pltpu.VMEM((tm, tn), jnp.float32),
                       pltpu.VMEM((tm, tn), jnp.float32)]
                      if num_k > 1 else [])

    est = _vmem_bytes(tm, tn, tk, num_k, x_bytes, w_bytes, x_bytes)
    vmem_limit = int(min(max(est * 5 // 4, 32 * 1024 * 1024), 100 * 1024 * 1024))

    kernel = functools.partial(_geglu_kernel, num_k=num_k)

    out2d = pl.pallas_call(
        kernel,
        out_shape=jax.ShapeDtypeStruct((M, dim_out_p), x.dtype),
        grid_spec=pltpu.PrefetchScalarGridSpec(
            num_scalar_prefetch=0,
            grid=grid,
            in_specs=[
                pl.BlockSpec((tm, tk), lambda j, i, k: (i, k)),        # x row tile
                pl.BlockSpec((2, tn, tk), lambda j, i, k: (0, j, k)),  # weight col-block (both halves)
                pl.BlockSpec((2, tn), lambda j, i, k: (0, j)),         # bias col-block
            ],
            out_specs=pl.BlockSpec((tm, tn), lambda j, i, k: (i, j)),
            scratch_shapes=scratch_shapes),
        compiler_params=pltpu.CompilerParams(
            # Only the dim_out axis is parallel: on v7x megacore the 2 TCs split
            # columns so the dominant weight stream is not duplicated.
            dimension_semantics=("parallel", "arbitrary", "arbitrary"),
            vmem_limit_bytes=vmem_limit),
    )(x2d, w3, b2)

    if dim_out_p != dim_out:
        out2d = out2d[:, :dim_out]
    return out2d.reshape(*lead_shape, dim_out)


def _geglu_ref(x, w_proj, b_proj):
    y = jnp.einsum("...i,oi->...o", x, w_proj) + b_proj
    dim_out = w_proj.shape[0] // 2
    h, g = y[..., :dim_out], y[..., dim_out:]
    return h * jax.nn.gelu(g, approximate=False)


if __name__ == "__main__":
    key = jax.random.PRNGKey(0)

    # --- main small demo (lane-dense dim_out, exact tiles) -------------------
    k1, k2, k3 = jax.random.split(key, 3)
    batch, seq, dim_in, dim_out = 2, 8, 128, 128
    x = jax.random.normal(k1, (batch, seq, dim_in), dtype=jnp.float32)
    w_proj = jax.random.normal(k2, (2 * dim_out, dim_in), dtype=jnp.float32) * 0.05
    b_proj = jax.random.normal(k3, (2 * dim_out,), dtype=jnp.float32) * 0.05

    out = jax.block_until_ready(geglu(x, w_proj, b_proj))
    ref = _geglu_ref(x, w_proj, b_proj)
    assert out.shape == (batch, seq, dim_out)
    assert jnp.allclose(out, ref, atol=1e-5, rtol=1e-5), float(jnp.max(jnp.abs(out - ref)))

    # --- ragged demo: partial row block + dim_out padded to 128 --------------
    k4, k5, k6 = jax.random.split(k3, 3)
    b2_, s2_, di2, do2 = 3, 5, 96, 72
    x2 = jax.random.normal(k4, (b2_, s2_, di2), dtype=jnp.float32)
    w2 = jax.random.normal(k5, (2 * do2, di2), dtype=jnp.float32) * 0.05
    bb2 = jax.random.normal(k6, (2 * do2,), dtype=jnp.float32) * 0.05

    out2 = jax.block_until_ready(geglu(x2, w2, bb2))
    ref2 = _geglu_ref(x2, w2, bb2)
    assert out2.shape == (b2_, s2_, do2)
    assert jnp.allclose(out2, ref2, atol=1e-5, rtol=1e-5), float(jnp.max(jnp.abs(out2 - ref2)))

    print("KERNEL_OK")
</pallas_src>

<mosaic_0001>
module attributes {stable_mosaic.version = 11 : i64} {
  func.func @_geglu_kernel(%arg0: i32, %arg1: i32, %arg2: i32, %arg3: memref<16x128xf32, #tpu.memory_space<vmem>>, %arg4: memref<2x128x128xf32, #tpu.memory_space<vmem>>, %arg5: memref<2x128xf32, #tpu.memory_space<vmem>>, %arg6: memref<16x128xf32, #tpu.memory_space<vmem>>) attributes {dimension_semantics = [#tpu.dimension_semantics<parallel>, #tpu.dimension_semantics<arbitrary>, #tpu.dimension_semantics<arbitrary>], iteration_bounds = array<i64: 1, 1, 1>, scalar_prefetch = 0 : i64, scratch_operands = 0 : i64, tpu.core_type = #tpu.core_type<tc>, window_params = [{transform_indices = @transform_0, window_bounds = array<i64: 16, 128>}, {transform_indices = @transform_1, window_bounds = array<i64: 2, 128, 128>}, {transform_indices = @transform_2, window_bounds = array<i64: 2, 128>}, {transform_indices = @transform_3, window_bounds = array<i64: 16, 128>}]} {
    %c0 = arith.constant 0 : index
    %c0_0 = arith.constant 0 : index
    %0 = vector.load %arg3[%c0, %c0_0] : memref<16x128xf32, #tpu.memory_space<vmem>>, vector<16x128xf32>
    %c0_1 = arith.constant 0 : index
    %c0_2 = arith.constant 0 : index
    %c0_3 = arith.constant 0 : index
    %1 = vector.load %arg4[%c0_1, %c0_2, %c0_3] : memref<2x128x128xf32, #tpu.memory_space<vmem>>, vector<1x128x128xf32>
    %2 = vector.shape_cast %1 : vector<1x128x128xf32> to vector<128x128xf32>
    %cst = arith.constant dense<0.000000e+00> : vector<16x128xf32>
    %3 = tpu.matmul %0, %2, %cst {dimension_numbers = #tpu.dot_dimension_numbers<[1], [1], [0], [0], [0, 0, 1, 0], [], []>} : vector<16x128xf32>, vector<128x128xf32>, vector<16x128xf32> -> vector<16x128xf32>
    %c1 = arith.constant 1 : index
    %c0_4 = arith.constant 0 : index
    %c0_5 = arith.constant 0 : index
    %4 = vector.load %arg4[%c1, %c0_4, %c0_5] : memref<2x128x128xf32, #tpu.memory_space<vmem>>, vector<1x128x128xf32>
    %5 = vector.shape_cast %4 : vector<1x128x128xf32> to vector<128x128xf32>
    %cst_6 = arith.constant dense<0.000000e+00> : vector<16x128xf32>
    %6 = tpu.matmul %0, %5, %cst_6 {dimension_numbers = #tpu.dot_dimension_numbers<[1], [1], [0], [0], [0, 0, 1, 0], [], []>} : vector<16x128xf32>, vector<128x128xf32>, vector<16x128xf32> -> vector<16x128xf32>
    %c0_7 = arith.constant 0 : index
    %c0_8 = arith.constant 0 : index
    %7 = vector.load %arg5[%c0_7, %c0_8] : memref<2x128xf32, #tpu.memory_space<vmem>>, vector<2x128xf32>
    %8 = vector.extract_strided_slice %7 {offsets = [0, 0], sizes = [1, 128], strides = [1, 1]} : vector<2x128xf32> to vector<1x128xf32>
    %9 = vector.broadcast %8 : vector<1x128xf32> to vector<16x128xf32>
    %10 = arith.addf %3, %9 : vector<16x128xf32>
    %11 = vector.extract_strided_slice %7 {offsets = [1, 0], sizes = [1, 128], strides = [1, 1]} : vector<2x128xf32> to vector<1x128xf32>
    %12 = vector.broadcast %11 : vector<1x128xf32> to vector<16x128xf32>
    %13 = arith.addf %6, %12 : vector<16x128xf32>
    %cst_9 = arith.constant 5.000000e-01 : f32
    %14 = vector.broadcast %cst_9 : f32 to vector<16x128xf32>
    %15 = arith.mulf %14, %13 : vector<16x128xf32>
    %cst_10 = arith.constant 0.707106769 : f32
    %16 = vector.broadcast %cst_10 : f32 to vector<16x128xf32>
    %17 = arith.mulf %13, %16 : vector<16x128xf32>
    %18 = math.erf %17 : vector<16x128xf32>
    %cst_11 = arith.constant 1.000000e+00 : f32
    %19 = vector.broadcast %cst_11 : f32 to vector<16x128xf32>
    %20 = arith.addf %19, %18 : vector<16x128xf32>
    %21 = arith.mulf %15, %20 : vector<16x128xf32>
    %22 = arith.mulf %10, %21 : vector<16x128xf32>
    %c0_12 = arith.constant 0 : index
    %c0_13 = arith.constant 0 : index
    %23 = vector.load %arg6[%c0_12, %c0_13] : memref<16x128xf32, #tpu.memory_space<vmem>>, vector<16x128xf32>
    tpu.vector_store %arg6[%c0_12, %c0_13], %22 {strides = array<i32>} : memref<16x128xf32, #tpu.memory_space<vmem>>, vector<16x128xf32>,
    return
  }
  func.func @transform_0(%arg0: i32, %arg1: i32, %arg2: i32) -> (i32, i32) {
    %c0_i32 = arith.constant 0 : i32
    return %arg1, %arg2 : i32, i32
  }
  func.func @transform_1(%arg0: i32, %arg1: i32, %arg2: i32) -> (i32, i32, i32) {
    %c0_i32 = arith.constant 0 : i32
    %c0_i32_0 = arith.constant 0 : i32
    return %c0_i32, %arg0, %arg2 : i32, i32, i32
  }
  func.func @transform_2(%arg0: i32, %arg1: i32, %arg2: i32) -> (i32, i32) {
    %c0_i32 = arith.constant 0 : i32
    %c0_i32_0 = arith.constant 0 : i32
    return %c0_i32, %arg0 : i32, i32
  }
  func.func @transform_3(%arg0: i32, %arg1: i32, %arg2: i32) -> (i32, i32) {
    %c0_i32 = arith.constant 0 : i32
    return %arg1, %arg0 : i32, i32
  }
}

</mosaic_0001>

<llo_original>
// kernel: geglu.1
$region0: #{geglu.1}
  #allocation0 [shape = 'u32[]', space=smem, size = 0x4, offset = 0x4, fixed_abs, tag = 'smem constant byte address 0x4 - core index']
  #allocation1 [shape = 'u32[144,128]{1,0:T(1,128)}', space=vmem, size = 0x12000, scoped, tag = 'internal scratch']
  %s0 = inlined_call_operand.hbm [shape: f32[16,128], index: 0, kind: input, shape index: {}]
  %s1 = inlined_call_operand.hbm [shape: f32[2,128,128], index: 1, kind: input, shape index: {}]
  %s2 = inlined_call_operand.vmem [shape: f32[2,128], index: 2, kind: input, shape index: {}]
  %s3 = inlined_call_operand.hbm [shape: f32[16,128], index: 3, kind: output, shape index: {}]
  %s4 = sld [smem:[#allocation0]]
  $region30: #{geglu.1} parent=0
    _
  %s6 = ssub.s32 1, %s4
  %s7 = scalar_select 0, %s6, %s4
  $region1: #{geglu.1} parent=0
    #allocation2 [shape = 'u8[8192]{0}', space=vmem, size = 0x2000, scoped, tag = 'input window, operand 0, single buffered']
    #allocation3 [shape = 's32[1]{0}', space=sflag, size = 0x4, scoped, tag = 'scoped memory for geglu.1']
    #allocation4 [shape = 's32[1]{0}', space=sflag, size = 0x4, scoped, tag = 'scoped memory for geglu.1']
    #allocation5 [shape = 'u8[131072]{0}', space=vmem, size = 0x20000, scoped, tag = 'input window, operand 1, single buffered']
    #allocation6 [shape = 's32[1]{0}', space=sflag, size = 0x4, scoped, tag = 'scoped memory for geglu.1']
    #allocation7 [shape = 'u8[8192]{0}', space=vmem, size = 0x2000, scoped, tag = 'output window, operand 0, single buffered']
    %8 = vsyncpa [#allocation3], 0
    %9 = vsyncpa [#allocation6], 0
    %10 = vsyncpa [#allocation4], 0
    // Predicated region
    $region2: #{geglu.1} parent=1 // pred_check
      _
    $region3: #{geglu.1} parent=1 // pred_check_branch
      %12 = sbr.rel (0) target = $region5
    $region4: #{geglu.1} parent=1 // pred_region
      %s14 = ssub.s32 256, 256
      %15 = vsyncadd [#allocation3], %s14
      %s16 = sshll.u32 [#allocation2], 4
      %s17 = int_to_ptr.vmem [resolvable:$true] %s16
      %22 = dma.hbm_to_vmem [thread:$0]  %s0, 256, %s17, [#allocation3], 128, 128, 8
    $region5: #{geglu.1} parent=1 // pred_fallthru
      _
    // Predicated region
    $region6: #{geglu.1} parent=1 // pred_check
      _
    $region7: #{geglu.1} parent=1 // pred_check_branch
      %24 = sbr.rel (0) target = $region9
    $region8: #{geglu.1} parent=1 // pred_region
      %s26 = ssub.s32 4096, 4096
      %27 = vsyncadd [#allocation6], %s26
      %s28 = sshll.u32 [#allocation5], 4
      %s29 = int_to_ptr.vmem [resolvable:$true] %s28
      %34 = dma.hbm_to_vmem [thread:$0]  %s1, 4096, %s29, [#allocation6], 128, 128, 8
    $region9: #{geglu.1} parent=1 // pred_fallthru
      _
    // Predicated region
    $region10: #{geglu.1} parent=1 // pred_check
      _
    $region11: #{geglu.1} parent=1 // pred_check_branch
      %36 = sbr.rel (0) target = $region13
    $region12: #{geglu.1} parent=1 // pred_region
      _
    $region13: #{geglu.1} parent=1 // pred_fallthru
      _
    // Predicated region
    $region14: #{geglu.1} parent=1 // pred_check
      _
    $region15: #{geglu.1} parent=1 // pred_check_branch
      %38 = sbr.rel (0) target = $region17
    $region16: #{geglu.1} parent=1 // pred_region
      %39 = dma.done [#allocation3], 256
    $region17: #{geglu.1} parent=1 // pred_fallthru
      _
    // Predicated region
    $region18: #{geglu.1} parent=1 // pred_check
      _
    $region19: #{geglu.1} parent=1 // pred_check_branch
      %41 = sbr.rel (0) target = $region21
    $region20: #{geglu.1} parent=1 // pred_region
      %42 = dma.done [#allocation6], 4096
    $region21: #{geglu.1} parent=1 // pred_fallthru
      _
    %v43 = vld [vmem:[#allocation2] sm:$0xff]
    %v44 = vld [vmem:[#allocation2 + $0x8] sm:$0xff]
    %v45 = vld [vmem:[#allocation5] sm:$0xff]
    %v46 = vld [vmem:[#allocation5 + $0x8] sm:$0xff]
    %v47 = vld [vmem:[#allocation5 + $0x10] sm:$0xff]
    %v48 = vld [vmem:[#allocation5 + $0x18] sm:$0xff]
    %v49 = vld [vmem:[#allocation5 + $0x20] sm:$0xff]
    %v50 = vld [vmem:[#allocation5 + $0x28] sm:$0xff]
    %v51 = vld [vmem:[#allocation5 + $0x30] sm:$0xff]
    %v52 = vld [vmem:[#allocation5 + $0x38] sm:$0xff]
    %v53 = vld [vmem:[#allocation5 + $0x40] sm:$0xff]
    %v54 = vld [vmem:[#allocation5 + $0x48] sm:$0xff]
    %v55 = vld [vmem:[#allocation5 + $0x50] sm:$0xff]
    %v56 = vld [vmem:[#allocation5 + $0x58] sm:$0xff]
    %v57 = vld [vmem:[#allocation5 + $0x60] sm:$0xff]
    %v58 = vld [vmem:[#allocation5 + $0x68] sm:$0xff]
    %v59 = vld [vmem:[#allocation5 + $0x70] sm:$0xff]
    %v60 = vld [vmem:[#allocation5 + $0x78] sm:$0xff]
    %s61 = scalar_lea.vmem [#allocation5], 128
    %v62 = vld [vmem:[%s61] sm:$0xff]
    %v63 = vld [vmem:[%s61 + $0x8] sm:$0xff]
    %v64 = vld [vmem:[%s61 + $0x10] sm:$0xff]
    %v65 = vld [vmem:[%s61 + $0x18] sm:$0xff]
    %v66 = vld [vmem:[%s61 + $0x20] sm:$0xff]
    %v67 = vld [vmem:[%s61 + $0x28] sm:$0xff]
    %v68 = vld [vmem:[%s61 + $0x30] sm:$0xff]
    %v69 = vld [vmem:[%s61 + $0x38] sm:$0xff]
    %v70 = vld [vmem:[%s61 + $0x40] sm:$0xff]
    %v71 = vld [vmem:[%s61 + $0x48] sm:$0xff]
    %v72 = vld [vmem:[%s61 + $0x50] sm:$0xff]
    %v73 = vld [vmem:[%s61 + $0x58] sm:$0xff]
    %v74 = vld [vmem:[%s61 + $0x60] sm:$0xff]
    %v75 = vld [vmem:[%s61 + $0x68] sm:$0xff]
    %v76 = vld [vmem:[%s61 + $0x70] sm:$0xff]
    %v77 = vld [vmem:[%s61 + $0x78] sm:$0xff]
    %v78 = vld [vmem:[%s2] sm:$0x3]
    %v79 = vlaneseq
    %v80 = vshrl.u32 %v79, 7
    %v81 = vsub.s32 0, %v80
    %v82 = vrot.slane %v78, %v81
    %83 = vmatprep.subr.mxu0 0.0
    %84 = vmatpush1.xpose.msra.mxu0 %v45
    %85 = vmatprep.subr.mxu0 0.0
    %86 = vmatpush1.xpose.msra.mxu0 %v46
    %87 = vmatprep.subr.mxu0 0.0
    %88 = vmatpush1.xpose.msra.mxu0 %v47
    %89 = vmatprep.subr.mxu0 0.0
    %90 = vmatpush1.xpose.msra.mxu0 %v48
    %91 = vmatprep.subr.mxu0 0.0
    %92 = vmatpush1.xpose.msra.mxu0 %v49
    %93 = vmatprep.subr.mxu0 0.0
    %94 = vmatpush1.xpose.msra.mxu0 %v50
    %95 = vmatprep.subr.mxu0 0.0
    %96 = vmatpush1.xpose.msra.mxu0 %v51
    %97 = vmatprep.subr.mxu0 0.0
    %98 = vmatpush1.xpose.msra.mxu0 %v52
    %99 = vmatprep.subr.mxu0 0.0
    %100 = vmatpush1.xpose.msra.mxu0 %v53
    %101 = vmatprep.subr.mxu0 0.0
    %102 = vmatpush1.xpose.msra.mxu0 %v54
    %103 = vmatprep.subr.mxu0 0.0
    %104 = vmatpush1.xpose.msra.mxu0 %v55
    %105 = vmatprep.subr.mxu0 0.0
    %106 = vmatpush1.xpose.msra.mxu0 %v56
    %107 = vmatprep.subr.mxu0 0.0
    %108 = vmatpush1.xpose.msra.mxu0 %v57
    %109 = vmatprep.subr.mxu0 0.0
    %110 = vmatpush1.xpose.msra.mxu0 %v58
    %111 = vmatprep.subr.mxu0 0.0
    %112 = vmatpush1.xpose.msra.mxu0 %v59
    %113 = vmatprep.subr.mxu0 0.0
    %114 = vmatpush1.xpose.msra.mxu0 %v60
    %115 = vmatprep.subr.mxu0 0.0
    %116 = vmatpush1.xpose.msra.mxu0 0.0
    %117 = vmatprep.subr.mxu0 0.0
    %118 = vmatpush1.xpose.msra.mxu0 0.0
    %119 = vmatprep.subr.mxu0 0.0
    %120 = vmatpush1.xpose.msra.mxu0 0.0
    %121 = vmatprep.subr.mxu0 0.0
    %122 = vmatpush1.xpose.msra.mxu0 0.0
    %123 = vmatprep.subr.mxu0 0.0
    %124 = vmatpush1.xpose.msra.mxu0 0.0
    %125 = vmatprep.subr.mxu0 0.0
    %126 = vmatpush1.xpose.msra.mxu0 0.0
    %127 = vmatprep.subr.mxu0 0.0
    %128 = vmatpush1.xpose.msra.mxu0 0.0
    %129 = vmatprep.subr.mxu0 0.0
    %130 = vmatpush1.xpose.msra.mxu0 0.0
    %131 = vmatprep.subr.mxu0 0.0
    %132 = vmatpush1.xpose.msra.mxu0 0.0
    %133 = vmatprep.subr.mxu0 0.0
    %134 = vmatpush1.xpose.msra.mxu0 0.0
    %135 = vmatprep.subr.mxu0 0.0
    %136 = vmatpush1.xpose.msra.mxu0 0.0
    %137 = vmatprep.subr.mxu0 0.0
    %138 = vmatpush1.xpose.msra.mxu0 0.0
    %139 = vmatprep.subr.mxu0 0.0
    %140 = vmatpush1.xpose.msra.mxu0 0.0
    %141 = vmatprep.subr.mxu0 0.0
    %142 = vmatpush1.xpose.msra.mxu0 0.0
    %143 = vmatprep.subr.mxu0 0.0
    %144 = vmatpush1.xpose.msra.mxu0 0.0
    %145 = vmatprep.subr.mxu0 0.0
    %146 = vmatpush1.xpose.msra.mxu0 0.0
    %147 = vmatprep.mubr.f32.mxu0 0.0
    %148 = vmatmul.mubr.f32.gmra.mrb[0].mxu0 %v43
    %v149 = vpop.f32.mrb[0].mxu0
    %v150 = vadd.f32 %v82, %v149
    %v151 = vpop.f32.mrb[0].mxu0
    %152 = vmatprep.mubr.f32.mxu0 0.0
    %153 = vmatmul.mubr.f32.gmra.mrb[0].mxu0 %v44
    %v154 = vpop.f32.mrb[0].mxu0
    %v155 = vadd.f32 %v82, %v154
    %v156 = vpop.f32.mrb[0].mxu0
    %157 = vdwg.mxu0
    %v158 = vlaneseq
    %v159 = vshrl.u32 %v158, 7
    %v160 = vsub.s32 1, %v159
    %v161 = vrot.slane %v78, %v160
    %162 = vmatprep.subr.mxu0 0.0
    %163 = vmatpush1.xpose.msra.mxu0 %v62
    %164 = vmatprep.subr.mxu0 0.0
    %165 = vmatpush1.xpose.msra.mxu0 %v63
    %166 = vmatprep.subr.mxu0 0.0
    %167 = vmatpush1.xpose.msra.mxu0 %v64
    %168 = vmatprep.subr.mxu0 0.0
    %169 = vmatpush1.xpose.msra.mxu0 %v65
    %170 = vmatprep.subr.mxu0 0.0
    %171 = vmatpush1.xpose.msra.mxu0 %v66
    %172 = vmatprep.subr.mxu0 0.0
    %173 = vmatpush1.xpose.msra.mxu0 %v67
    %174 = vmatprep.subr.mxu0 0.0
    %175 = vmatpush1.xpose.msra.mxu0 %v68
    %176 = vmatprep.subr.mxu0 0.0
    %177 = vmatpush1.xpose.msra.mxu0 %v69
    %178 = vmatprep.subr.mxu0 0.0
    %179 = vmatpush1.xpose.msra.mxu0 %v70
    %180 = vmatprep.subr.mxu0 0.0
    %181 = vmatpush1.xpose.msra.mxu0 %v71
    %182 = vmatprep.subr.mxu0 0.0
    %183 = vmatpush1.xpose.msra.mxu0 %v72
    %184 = vmatprep.subr.mxu0 0.0
    %185 = vmatpush1.xpose.msra.mxu0 %v73
    %186 = vmatprep.subr.mxu0 0.0
    %187 = vmatpush1.xpose.msra.mxu0 %v74
    %188 = vmatprep.subr.mxu0 0.0
    %189 = vmatpush1.xpose.msra.mxu0 %v75
    %190 = vmatprep.subr.mxu0 0.0
    %191 = vmatpush1.xpose.msra.mxu0 %v76
    %192 = vmatprep.subr.mxu0 0.0
    %193 = vmatpush1.xpose.msra.mxu0 %v77
    %194 = vmatprep.subr.mxu0 0.0
    %195 = vmatpush1.xpose.msra.mxu0 0.0
    %196 = vmatprep.subr.mxu0 0.0
    %197 = vmatpush1.xpose.msra.mxu0 0.0
    %198 = vmatprep.subr.mxu0 0.0
    %199 = vmatpush1.xpose.msra.mxu0 0.0
    %200 = vmatprep.subr.mxu0 0.0
    %201 = vmatpush1.xpose.msra.mxu0 0.0
    %202 = vmatprep.subr.mxu0 0.0
    %203 = vmatpush1.xpose.msra.mxu0 0.0
    %204 = vmatprep.subr.mxu0 0.0
    %205 = vmatpush1.xpose.msra.mxu0 0.0
    %206 = vmatprep.subr.mxu0 0.0
    %207 = vmatpush1.xpose.msra.mxu0 0.0
    %208 = vmatprep.subr.mxu0 0.0
    %209 = vmatpush1.xpose.msra.mxu0 0.0
    %210 = vmatprep.subr.mxu0 0.0
    %211 = vmatpush1.xpose.msra.mxu0 0.0
    %212 = vmatprep.subr.mxu0 0.0
    %213 = vmatpush1.xpose.msra.mxu0 0.0
    %214 = vmatprep.subr.mxu0 0.0
    %215 = vmatpush1.xpose.msra.mxu0 0.0
    %216 = vmatprep.subr.mxu0 0.0
    %217 = vmatpush1.xpose.msra.mxu0 0.0
    %218 = vmatprep.subr.mxu0 0.0
    %219 = vmatpush1.xpose.msra.mxu0 0.0
    %220 = vmatprep.subr.mxu0 0.0
    %221 = vmatpush1.xpose.msra.mxu0 0.0
    %222 = vmatprep.subr.mxu0 0.0
    %223 = vmatpush1.xpose.msra.mxu0 0.0
    %224 = vmatprep.subr.mxu0 0.0
    %225 = vmatpush1.xpose.msra.mxu0 0.0
    %226 = vmatprep.mubr.f32.mxu0 0.0
    %227 = vmatmul.mubr.f32.gmra.mrb[0].mxu0 %v43
    %v228 = vpop.f32.mrb[0].mxu0
    %v229 = vadd.f32 %v161, %v228
    %v230 = vpop.f32.mrb[0].mxu0
    %231 = vmatprep.mubr.f32.mxu0 0.0
    %232 = vmatmul.mubr.f32.gmra.mrb[0].mxu0 %v44
    %v233 = vpop.f32.mrb[0].mxu0
    %v234 = vadd.f32 %v161, %v233
    %v235 = vpop.f32.mrb[0].mxu0
    %236 = vdwg.mxu0
    %v237 = vmul.f32 %v229, 0.5
    %v238 = vmul.f32 %v234, 0.5
    %v239 = vmul.f32 %v229, 0.70710677
    %v240 = vmul.f32 %v234, 0.70710677
    %v241 = verf.f32.pop %v239
    %v242 = verf.f32.pop %v240
    %v243 = vadd.f32 %v241, 1.0
    %v244 = vadd.f32 %v242, 1.0
    %v245 = vmul.f32 %v237, %v243
    %v246 = vmul.f32 %v238, %v244
    %v247 = vmul.f32 %v150, %v245
    %v248 = vmul.f32 %v155, %v246
    %249 = vst [vmem:[#allocation7] sm:$0xff] %v247
    %250 = vst [vmem:[#allocation7 + $0x8] sm:$0xff] %v248
    // Predicated region
    $region22: #{geglu.1} parent=1 // pred_check
      _
    $region23: #{geglu.1} parent=1 // pred_check_branch
      %252 = sbr.rel (0) target = $region25
    $region24: #{geglu.1} parent=1 // pred_region
      %s254 = ssub.s32 256, 256
      %255 = vsyncadd [#allocation4], %s254
      %s256 = sshll.u32 [#allocation7], 4
      %s257 = int_to_ptr.vmem [resolvable:$true] %s256
      %262 = dma.vmem_to_hbm [thread:$0]  %s257, 256, %s3, [#allocation4], 128, 128, 8
    $region25: #{geglu.1} parent=1 // pred_fallthru
      _
    // Predicated region
    $region26: #{geglu.1} parent=1 // pred_check
      _
    $region27: #{geglu.1} parent=1 // pred_check_branch
      %264 = sbr.rel (0) target = $region29
    $region28: #{geglu.1} parent=1 // pred_region
      %265 = dma.done [#allocation4], 256
    $region29: #{geglu.1} parent=1 // pred_fallthru
      _
    %266 = vsyncpa [#allocation3], 1
    %267 = vsyncpa [#allocation6], 1
    %268 = vsyncpa [#allocation4], 1

</llo_original>
